<compile_context>
chip_gen: v5e
topology: v5e:2x2
jax: 0.10.0
libtpu: 0.0.40
codegen_flags: <defaults>
</compile_context>

<pallas_src>
import jax
import jax.numpy as jnp
from jax.experimental import pallas as pl
from jax.experimental.pallas import tpu as pltpu

_LANES = 128
_ROW_ALIGN = 256        # row-tile multiple legal for f32 / int8 / bool tiles
_MIN_SPLIT_ROWS = 1024  # only split a small input in two if each half >= 512 rows


def _eltwise_kernel(x0_ref, x1_ref, x2_ref, x3_ref, x4_ref,
                    add_ref, sub_ref, mul_ref, div_ref, cmp_ref):
    a0 = x0_ref[...]
    a1 = x1_ref[...]
    a2 = x2_ref[...]
    a3 = x3_ref[...]
    a4 = x4_ref[...]

    add_ref[...] = a0 + a1                          # torch.add(inputs[0], inputs[1])
    sub_ref[...] = a2 - a3                          # torch.sub(inputs[2], inputs[3])
    mul_ref[...] = a0 * a4                          # torch.mul(inputs[0], inputs[4])
    # Exact VPU divide: the kernel is HBM-bound, the VPU has 3-6x slack, and an
    # approx reciprocal would risk the 1e-5 tolerance for zero gain.
    div_ref[...] = a3 / (a1 + jnp.float32(1e-05))   # torch.div(inputs[3], inputs[1]+1e-5)
    cmp_ref[...] = a2 > a0                          # inputs[2] > inputs[0]  (bool store)


def _tiling_config():
    """Return (max_block_rows, vmem_limit_bytes), gated by TPU generation."""
    try:
        kind = jax.devices()[0].device_kind.lower()
    except Exception:
        kind = ""
    if "v6" in kind:
        # 128 MiB physical VMEM: 2 MiB/stream tiles shave the last few % of the
        # ~0.35 us per-step overhead; needs a raised scoped-VMEM limit.
        return 4096, 64 * 1024 * 1024
    if "v5" in kind:
        # 128 MiB physical VMEM but slowest HBM (~0.8 TB/s): step overhead is already
        # ~5% at 1 MiB/stream, bigger tiles buy nothing.  The 32 MiB limit (default
        # scoped VMEM on v5e is 16 MiB) is what makes this tile size legal.
        return 2048, 32 * 1024 * 1024
    # v7x (64 MiB physical VMEM per TC) or unknown generation: stay conservative.
    return 2048, 32 * 1024 * 1024


def _choose_block_rows(rows, max_block_rows):
    """Pick a 256-aligned row tile; prefer an even grid (>= 2 steps) for v7x's 2 TCs."""
    if rows <= max_block_rows:
        # Small/medium input: split into two even steps when cheap so both v7x
        # TensorCores get work; otherwise a single full-slab step (grid=(1,)).
        if rows >= _MIN_SPLIT_ROWS and rows % (2 * _ROW_ALIGN) == 0:
            return rows // 2
        return rows
    # Large input: even number of steps (balances v7x's two cores, avoids a tiny
    # tail step), each block 256-row aligned and <= max_block_rows.
    n_steps = pl.cdiv(rows, max_block_rows)
    if n_steps % 2:
        n_steps += 1
    block_rows = -(-rows // n_steps)                          # ceil(rows / n_steps)
    block_rows = -(-block_rows // _ROW_ALIGN) * _ROW_ALIGN    # round up to 256
    return min(block_rows, max_block_rows)


def _build_call(flat_shape, block_rows, vmem_limit_bytes):
    rows, lanes = flat_shape
    grid = (pl.cdiv(rows, block_rows),)
    spec = pl.BlockSpec((block_rows, lanes), lambda i: (i, 0))
    n = rows * lanes
    out_shapes = (
        jax.ShapeDtypeStruct(flat_shape, jnp.float32),  # add
        jax.ShapeDtypeStruct(flat_shape, jnp.float32),  # sub
        jax.ShapeDtypeStruct(flat_shape, jnp.float32),  # mul
        jax.ShapeDtypeStruct(flat_shape, jnp.float32),  # div
        jax.ShapeDtypeStruct(flat_shape, jnp.bool_),    # cmp
    )
    return pl.pallas_call(
        _eltwise_kernel,
        out_shape=out_shapes,
        grid=grid,
        in_specs=[spec] * 5,
        out_specs=[spec] * 5,
        compiler_params=pltpu.CompilerParams(
            # Row axis is independent -> shard across TensorCores on v7x (no-op on
            # single-TC v5e/v6e).  Grid sizing above keeps it even / >= 2 steps for
            # any non-trivial input so the second core actually gets work.
            dimension_semantics=("parallel",),
            vmem_limit_bytes=vmem_limit_bytes,
        ),
        cost_estimate=pl.CostEstimate(
            flops=7 * n,                       # add, sub, mul, add-eps, div, cmp
            transcendentals=0,
            bytes_accessed=(5 * 4 + 4 * 4 + 1) * n,   # ~37 B / element
        ),
    )


def pt_module_forward(inputs):
    """inputs: sequence of 5 float32 arrays of identical shape (e.g. NCHW)."""
    x0, x1, x2, x3, x4 = inputs
    orig_shape = x0.shape
    total = int(x0.size)

    pad = (-total) % _LANES
    rows = (total + pad) // _LANES
    flat_shape = (rows, _LANES)

    def to_slab(x):
        flat = x.reshape(-1)
        if pad:
            # Zero padding: padded lanes compute 0/(0+1e-5)=0 and False -> no NaNs,
            # results are sliced off below.
            flat = jnp.pad(flat, (0, pad))
        return flat.reshape(flat_shape)

    xs = [to_slab(x) for x in (x0, x1, x2, x3, x4)]

    max_block_rows, vmem_limit = _tiling_config()
    block_rows = _choose_block_rows(rows, max_block_rows)

    outs = _build_call(flat_shape, block_rows, vmem_limit)(*xs)

    def from_slab(y):
        flat = y.reshape(-1)
        if pad:
            flat = flat[:total]
        return flat.reshape(orig_shape)

    return tuple(from_slab(o) for o in outs)


def _reference(inputs):
    return (
        inputs[0] + inputs[1],
        inputs[2] - inputs[3],
        inputs[0] * inputs[4],
        inputs[3] / (inputs[1] + 1e-05),
        inputs[2] > inputs[0],
    )


def _check(shape, key):
    keys = jax.random.split(key, 5)
    inputs = [jax.random.normal(k, shape, dtype=jnp.float32) for k in keys]
    outs = jax.block_until_ready(pt_module_forward(inputs))
    ref = _reference(inputs)
    for o, r in zip(outs[:4], ref[:4]):
        assert o.shape == r.shape and o.dtype == jnp.float32
        assert jnp.allclose(o, r, rtol=1e-5, atol=1e-5)
    assert outs[4].dtype == jnp.bool_
    assert jnp.array_equal(outs[4], ref[4])


if __name__ == "__main__":
    key = jax.random.PRNGKey(0)
    k0, k1, k2 = jax.random.split(key, 3)
    _check((2, 4, 16, 16), k0)    # small NCHW: single full-slab block, grid=(1,)
    _check((4, 8, 64, 128), k1)   # rows=2048 -> two even steps (dual-core friendly)
    _check((2, 3, 5, 7), k2)      # 210 elements (not a multiple of 128) -> padded path
    print("KERNEL_OK")
</pallas_src>

<mosaic_0001>
module attributes {stable_mosaic.version = 11 : i64} {
  func.func @_eltwise_kernel(%arg0: i32, %arg1: memref<16x128xf32, #tpu.memory_space<vmem>>, %arg2: memref<16x128xf32, #tpu.memory_space<vmem>>, %arg3: memref<16x128xf32, #tpu.memory_space<vmem>>, %arg4: memref<16x128xf32, #tpu.memory_space<vmem>>, %arg5: memref<16x128xf32, #tpu.memory_space<vmem>>, %arg6: memref<16x128xf32, #tpu.memory_space<vmem>>, %arg7: memref<16x128xf32, #tpu.memory_space<vmem>>, %arg8: memref<16x128xf32, #tpu.memory_space<vmem>>, %arg9: memref<16x128xf32, #tpu.memory_space<vmem>>, %arg10: memref<16x128xi32, #tpu.memory_space<vmem>>) attributes {dimension_semantics = [#tpu.dimension_semantics<parallel>], iteration_bounds = array<i64: 1>, scalar_prefetch = 0 : i64, scratch_operands = 0 : i64, tpu.core_type = #tpu.core_type<tc>, window_params = [{transform_indices = @transform_0, window_bounds = array<i64: 16, 128>}, {transform_indices = @transform_1, window_bounds = array<i64: 16, 128>}, {transform_indices = @transform_2, window_bounds = array<i64: 16, 128>}, {transform_indices = @transform_3, window_bounds = array<i64: 16, 128>}, {transform_indices = @transform_4, window_bounds = array<i64: 16, 128>}, {transform_indices = @transform_5, window_bounds = array<i64: 16, 128>}, {transform_indices = @transform_6, window_bounds = array<i64: 16, 128>}, {transform_indices = @transform_7, window_bounds = array<i64: 16, 128>}, {transform_indices = @transform_8, window_bounds = array<i64: 16, 128>}, {transform_indices = @transform_9, window_bounds = array<i64: 16, 128>}]} {
    %c0 = arith.constant 0 : index
    %c0_0 = arith.constant 0 : index
    %0 = vector.load %arg1[%c0, %c0_0] : memref<16x128xf32, #tpu.memory_space<vmem>>, vector<16x128xf32>
    %c0_1 = arith.constant 0 : index
    %c0_2 = arith.constant 0 : index
    %1 = vector.load %arg2[%c0_1, %c0_2] : memref<16x128xf32, #tpu.memory_space<vmem>>, vector<16x128xf32>
    %c0_3 = arith.constant 0 : index
    %c0_4 = arith.constant 0 : index
    %2 = vector.load %arg3[%c0_3, %c0_4] : memref<16x128xf32, #tpu.memory_space<vmem>>, vector<16x128xf32>
    %c0_5 = arith.constant 0 : index
    %c0_6 = arith.constant 0 : index
    %3 = vector.load %arg4[%c0_5, %c0_6] : memref<16x128xf32, #tpu.memory_space<vmem>>, vector<16x128xf32>
    %c0_7 = arith.constant 0 : index
    %c0_8 = arith.constant 0 : index
    %4 = vector.load %arg5[%c0_7, %c0_8] : memref<16x128xf32, #tpu.memory_space<vmem>>, vector<16x128xf32>
    %5 = arith.addf %0, %1 : vector<16x128xf32>
    %c0_9 = arith.constant 0 : index
    %c0_10 = arith.constant 0 : index
    %6 = vector.load %arg6[%c0_9, %c0_10] : memref<16x128xf32, #tpu.memory_space<vmem>>, vector<16x128xf32>
    tpu.vector_store %arg6[%c0_9, %c0_10], %5 {strides = array<i32>} : memref<16x128xf32, #tpu.memory_space<vmem>>, vector<16x128xf32>,
    %7 = arith.subf %2, %3 : vector<16x128xf32>
    %c0_11 = arith.constant 0 : index
    %c0_12 = arith.constant 0 : index
    %8 = vector.load %arg7[%c0_11, %c0_12] : memref<16x128xf32, #tpu.memory_space<vmem>>, vector<16x128xf32>
    tpu.vector_store %arg7[%c0_11, %c0_12], %7 {strides = array<i32>} : memref<16x128xf32, #tpu.memory_space<vmem>>, vector<16x128xf32>,
    %9 = arith.mulf %0, %4 : vector<16x128xf32>
    %c0_13 = arith.constant 0 : index
    %c0_14 = arith.constant 0 : index
    %10 = vector.load %arg8[%c0_13, %c0_14] : memref<16x128xf32, #tpu.memory_space<vmem>>, vector<16x128xf32>
    tpu.vector_store %arg8[%c0_13, %c0_14], %9 {strides = array<i32>} : memref<16x128xf32, #tpu.memory_space<vmem>>, vector<16x128xf32>,
    %cst = arith.constant 9.99999974E-6 : f32
    %11 = vector.broadcast %cst : f32 to vector<16x128xf32>
    %12 = arith.addf %1, %11 : vector<16x128xf32>
    %13 = arith.divf %3, %12 : vector<16x128xf32>
    %c0_15 = arith.constant 0 : index
    %c0_16 = arith.constant 0 : index
    %14 = vector.load %arg9[%c0_15, %c0_16] : memref<16x128xf32, #tpu.memory_space<vmem>>, vector<16x128xf32>
    tpu.vector_store %arg9[%c0_15, %c0_16], %13 {strides = array<i32>} : memref<16x128xf32, #tpu.memory_space<vmem>>, vector<16x128xf32>,
    %15 = arith.cmpf ogt, %2, %0 : vector<16x128xf32>
    %c0_17 = arith.constant 0 : index
    %c0_18 = arith.constant 0 : index
    %16 = vector.load %arg10[%c0_17, %c0_18] : memref<16x128xi32, #tpu.memory_space<vmem>>, vector<16x128xi32>
    %17 = arith.extui %15 : vector<16x128xi1> to vector<16x128xi32>
    %cst_19 = arith.constant dense<0> : vector<16x128xi32>
    %18 = arith.cmpi ne, %16, %cst_19 : vector<16x128xi32>
    tpu.vector_store %arg10[%c0_17, %c0_18], %17 {strides = array<i32>} : memref<16x128xi32, #tpu.memory_space<vmem>>, vector<16x128xi32>,
    return
  }
  func.func @transform_0(%arg0: i32) -> (i32, i32) {
    %c0_i32 = arith.constant 0 : i32
    %c0_i32_0 = arith.constant 0 : i32
    return %arg0, %c0_i32 : i32, i32
  }
  func.func @transform_1(%arg0: i32) -> (i32, i32) {
    %c0_i32 = arith.constant 0 : i32
    %c0_i32_0 = arith.constant 0 : i32
    return %arg0, %c0_i32 : i32, i32
  }
  func.func @transform_2(%arg0: i32) -> (i32, i32) {
    %c0_i32 = arith.constant 0 : i32
    %c0_i32_0 = arith.constant 0 : i32
    return %arg0, %c0_i32 : i32, i32
  }
  func.func @transform_3(%arg0: i32) -> (i32, i32) {
    %c0_i32 = arith.constant 0 : i32
    %c0_i32_0 = arith.constant 0 : i32
    return %arg0, %c0_i32 : i32, i32
  }
  func.func @transform_4(%arg0: i32) -> (i32, i32) {
    %c0_i32 = arith.constant 0 : i32
    %c0_i32_0 = arith.constant 0 : i32
    return %arg0, %c0_i32 : i32, i32
  }
  func.func @transform_5(%arg0: i32) -> (i32, i32) {
    %c0_i32 = arith.constant 0 : i32
    %c0_i32_0 = arith.constant 0 : i32
    return %arg0, %c0_i32 : i32, i32
  }
  func.func @transform_6(%arg0: i32) -> (i32, i32) {
    %c0_i32 = arith.constant 0 : i32
    %c0_i32_0 = arith.constant 0 : i32
    return %arg0, %c0_i32 : i32, i32
  }
  func.func @transform_7(%arg0: i32) -> (i32, i32) {
    %c0_i32 = arith.constant 0 : i32
    %c0_i32_0 = arith.constant 0 : i32
    return %arg0, %c0_i32 : i32, i32
  }
  func.func @transform_8(%arg0: i32) -> (i32, i32) {
    %c0_i32 = arith.constant 0 : i32
    %c0_i32_0 = arith.constant 0 : i32
    return %arg0, %c0_i32 : i32, i32
  }
  func.func @transform_9(%arg0: i32) -> (i32, i32) {
    %c0_i32 = arith.constant 0 : i32
    %c0_i32_0 = arith.constant 0 : i32
    return %arg0, %c0_i32 : i32, i32
  }
}

</mosaic_0001>

<llo_original>
// kernel: tpu_custom_call.1
$region0: #{tpu_custom_call.1}
  #allocation0 [shape = 'u32[]', space=smem, size = 0x4, offset = 0x4, fixed_abs, tag = 'smem constant byte address 0x4 - core index']
  #allocation1 [shape = 'u32[72,128]{1,0:T(1,128)}', space=vmem, size = 0x9000, scoped, tag = 'internal scratch']
  %s0 = inlined_call_operand.hbm [shape: f32[16,128], index: 0, kind: input, shape index: {}]
  %s1 = inlined_call_operand.hbm [shape: f32[16,128], index: 1, kind: input, shape index: {}]
  %s2 = inlined_call_operand.hbm [shape: f32[16,128], index: 2, kind: input, shape index: {}]
  %s3 = inlined_call_operand.hbm [shape: f32[16,128], index: 3, kind: input, shape index: {}]
  %s4 = inlined_call_operand.hbm [shape: f32[16,128], index: 4, kind: input, shape index: {}]
  %s5 = inlined_call_operand.hbm [shape: f32[16,128], index: 5, kind: output, shape index: {0}]
  %s6 = inlined_call_operand.hbm [shape: f32[16,128], index: 6, kind: output, shape index: {1}]
  %s7 = inlined_call_operand.hbm [shape: f32[16,128], index: 7, kind: output, shape index: {2}]
  %s8 = inlined_call_operand.hbm [shape: f32[16,128], index: 8, kind: output, shape index: {3}]
  %s9 = inlined_call_operand.vmem [shape: s32[16,128], index: 9, kind: output, shape index: {4}]
  %10 = xla_tuple %s5, %s6, %s7, %s8, %s9
  %s11 = sld [smem:[#allocation0]]
  $region82: #{tpu_custom_call.1} parent=0
    _
  %s13 = ssub.s32 1, %s11
  %s14 = scalar_select 0, %s13, %s11
  $region1: #{tpu_custom_call.1} parent=0
    #allocation2 [shape = 'u8[8192]{0}', space=vmem, size = 0x2000, scoped, tag = 'input window, operand 0, single buffered']
    #allocation3 [shape = 's32[1]{0}', space=sflag, size = 0x4, scoped, tag = 'scoped memory for tpu_custom_call.1']
    #allocation4 [shape = 's32[1]{0}', space=sflag, size = 0x4, scoped, tag = 'scoped memory for tpu_custom_call.1']
    #allocation5 [shape = 'u8[8192]{0}', space=vmem, size = 0x2000, scoped, tag = 'input window, operand 1, single buffered']
    #allocation6 [shape = 's32[1]{0}', space=sflag, size = 0x4, scoped, tag = 'scoped memory for tpu_custom_call.1']
    #allocation7 [shape = 'u8[8192]{0}', space=vmem, size = 0x2000, scoped, tag = 'input window, operand 2, single buffered']
    #allocation8 [shape = 'u8[8192]{0}', space=vmem, size = 0x2000, scoped, tag = 'input window, operand 3, single buffered']
    #allocation9 [shape = 's32[1]{0}', space=sflag, size = 0x4, scoped, tag = 'scoped memory for tpu_custom_call.1']
    #allocation10 [shape = 'u8[8192]{0}', space=vmem, size = 0x2000, scoped, tag = 'input window, operand 4, single buffered']
    #allocation11 [shape = 'u8[8192]{0}', space=vmem, size = 0x2000, scoped, tag = 'output window, operand 0, single buffered']
    #allocation12 [shape = 'u8[8192]{0}', space=vmem, size = 0x2000, scoped, tag = 'output window, operand 1, single buffered']
    #allocation13 [shape = 's32[1]{0}', space=sflag, size = 0x4, scoped, tag = 'scoped memory for tpu_custom_call.1']
    #allocation14 [shape = 'u8[8192]{0}', space=vmem, size = 0x2000, scoped, tag = 'output window, operand 2, single buffered']
    #allocation15 [shape = 'u8[8192]{0}', space=vmem, size = 0x2000, scoped, tag = 'output window, operand 3, single buffered']
    #allocation16 [shape = 's32[1]{0}', space=sflag, size = 0x4, scoped, tag = 'scoped memory for tpu_custom_call.1']
    %15 = vsyncpa [#allocation3], 0
    %16 = vsyncpa [#allocation6], 0
    %17 = vsyncpa [#allocation9], 0
    %18 = vsyncpa [#allocation4], 0
    %19 = vsyncpa [#allocation13], 0
    %20 = vsyncpa [#allocation16], 0
    // Predicated region
    $region2: #{tpu_custom_call.1} parent=1 // pred_check
      _
    $region3: #{tpu_custom_call.1} parent=1 // pred_check_branch
      %22 = sbr.rel (0) target = $region5
    $region4: #{tpu_custom_call.1} parent=1 // pred_region
      %24 = vsyncadd [#allocation3], 0
      %s25 = sshll.u32 %s0, 4
      %s26 = int_to_ptr.hbm [resolvable:$true] %s25
      %s27 = sshll.u32 [#allocation2], 4
      %s28 = int_to_ptr.vmem [resolvable:$true] %s27
      %33 = dma.hbm_to_vmem [thread:$0]  %s26, 256, %s28, [#allocation3], 128, 128, 8
    $region5: #{tpu_custom_call.1} parent=1 // pred_fallthru
      _
    // Predicated region
    $region6: #{tpu_custom_call.1} parent=1 // pred_check
      _
    $region7: #{tpu_custom_call.1} parent=1 // pred_check_branch
      %35 = sbr.rel (0) target = $region9
    $region8: #{tpu_custom_call.1} parent=1 // pred_region
      %37 = vsyncadd [#allocation6], 0
      %s38 = sshll.u32 %s1, 4
      %s39 = int_to_ptr.hbm [resolvable:$true] %s38
      %s40 = sshll.u32 [#allocation5], 4
      %s41 = int_to_ptr.vmem [resolvable:$true] %s40
      %46 = dma.hbm_to_vmem [thread:$0]  %s39, 256, %s41, [#allocation6], 128, 128, 8
    $region9: #{tpu_custom_call.1} parent=1 // pred_fallthru
      _
    // Predicated region
    $region10: #{tpu_custom_call.1} parent=1 // pred_check
      _
    $region11: #{tpu_custom_call.1} parent=1 // pred_check_branch
      %48 = sbr.rel (0) target = $region13
    $region12: #{tpu_custom_call.1} parent=1 // pred_region
      %50 = vsyncadd [#allocation6], 0
      %s51 = sshll.u32 %s2, 4
      %s52 = int_to_ptr.hbm [resolvable:$true] %s51
      %s53 = sshll.u32 [#allocation7], 4
      %s54 = int_to_ptr.vmem [resolvable:$true] %s53
      %59 = dma.hbm_to_vmem [thread:$0]  %s52, 256, %s54, [#allocation6], 128, 128, 8
    $region13: #{tpu_custom_call.1} parent=1 // pred_fallthru
      _
    // Predicated region
    $region14: #{tpu_custom_call.1} parent=1 // pred_check
      _
    $region15: #{tpu_custom_call.1} parent=1 // pred_check_branch
      %61 = sbr.rel (0) target = $region17
    $region16: #{tpu_custom_call.1} parent=1 // pred_region
      %63 = vsyncadd [#allocation9], 0
      %s64 = sshll.u32 %s3, 4
      %s65 = int_to_ptr.hbm [resolvable:$true] %s64
      %s66 = sshll.u32 [#allocation8], 4
      %s67 = int_to_ptr.vmem [resolvable:$true] %s66
      %72 = dma.hbm_to_vmem [thread:$0]  %s65, 256, %s67, [#allocation9], 128, 128, 8
    $region17: #{tpu_custom_call.1} parent=1 // pred_fallthru
      _
    // Predicated region
    $region18: #{tpu_custom_call.1} parent=1 // pred_check
      _
    $region19: #{tpu_custom_call.1} parent=1 // pred_check_branch
      %74 = sbr.rel (0) target = $region21
    $region20: #{tpu_custom_call.1} parent=1 // pred_region
      %76 = vsyncadd [#allocation9], 0
      %s77 = sshll.u32 %s4, 4
      %s78 = int_to_ptr.hbm [resolvable:$true] %s77
      %s79 = sshll.u32 [#allocation10], 4
      %s80 = int_to_ptr.vmem [resolvable:$true] %s79
      %85 = dma.hbm_to_vmem [thread:$0]  %s78, 256, %s80, [#allocation9], 128, 128, 8
    $region21: #{tpu_custom_call.1} parent=1 // pred_fallthru
      _
    // Predicated region
    $region22: #{tpu_custom_call.1} parent=1 // pred_check
      _
    $region23: #{tpu_custom_call.1} parent=1 // pred_check_branch
      %87 = sbr.rel (0) target = $region25
    $region24: #{tpu_custom_call.1} parent=1 // pred_region
      %89 = dma.done [#allocation3], 256
    $region25: #{tpu_custom_call.1} parent=1 // pred_fallthru
      _
    // Predicated region
    $region26: #{tpu_custom_call.1} parent=1 // pred_check
      _
    $region27: #{tpu_custom_call.1} parent=1 // pred_check_branch
      %91 = sbr.rel (0) target = $region29
    $region28: #{tpu_custom_call.1} parent=1 // pred_region
      %93 = dma.done [#allocation6], 256
    $region29: #{tpu_custom_call.1} parent=1 // pred_fallthru
      _
    // Predicated region
    $region30: #{tpu_custom_call.1} parent=1 // pred_check
      _
    $region31: #{tpu_custom_call.1} parent=1 // pred_check_branch
      %95 = sbr.rel (0) target = $region33
    $region32: #{tpu_custom_call.1} parent=1 // pred_region
      %97 = dma.done [#allocation6], 256
    $region33: #{tpu_custom_call.1} parent=1 // pred_fallthru
      _
    // Predicated region
    $region34: #{tpu_custom_call.1} parent=1 // pred_check
      _
    $region35: #{tpu_custom_call.1} parent=1 // pred_check_branch
      %99 = sbr.rel (0) target = $region37
    $region36: #{tpu_custom_call.1} parent=1 // pred_region
      %101 = dma.done [#allocation9], 256
    $region37: #{tpu_custom_call.1} parent=1 // pred_fallthru
      _
    // Predicated region
    $region38: #{tpu_custom_call.1} parent=1 // pred_check
      _
    $region39: #{tpu_custom_call.1} parent=1 // pred_check_branch
      %103 = sbr.rel (0) target = $region41
    $region40: #{tpu_custom_call.1} parent=1 // pred_region
      %105 = dma.done [#allocation9], 256
    $region41: #{tpu_custom_call.1} parent=1 // pred_fallthru
      _
    %v106 = vld [vmem:[#allocation2] sm:$0xff]
    %v107 = vld [vmem:[#allocation2 + $0x8] sm:$0xff]
    %v108 = vld [vmem:[#allocation5] sm:$0xff]
    %v109 = vld [vmem:[#allocation5 + $0x8] sm:$0xff]
    %v110 = vld [vmem:[#allocation7] sm:$0xff]
    %v111 = vld [vmem:[#allocation7 + $0x8] sm:$0xff]
    %v112 = vld [vmem:[#allocation8] sm:$0xff]
    %v113 = vld [vmem:[#allocation8 + $0x8] sm:$0xff]
    %v114 = vld [vmem:[#allocation10] sm:$0xff]
    %v115 = vld [vmem:[#allocation10 + $0x8] sm:$0xff]
    %v116 = vadd.f32 %v106, %v108
    %v117 = vadd.f32 %v107, %v109
    %118 = vst [vmem:[#allocation11] sm:$0xff] %v116
    %119 = vst [vmem:[#allocation11 + $0x8] sm:$0xff] %v117
    %v120 = vsub.f32 %v110, %v112
    %v121 = vsub.f32 %v111, %v113
    %122 = vst [vmem:[#allocation12] sm:$0xff] %v120
    %123 = vst [vmem:[#allocation12 + $0x8] sm:$0xff] %v121
    %v124 = vmul.f32 %v106, %v114
    %v125 = vmul.f32 %v107, %v115
    %126 = vst [vmem:[#allocation14] sm:$0xff] %v124
    %127 = vst [vmem:[#allocation14 + $0x8] sm:$0xff] %v125
    %v128 = vadd.f32 %v108, 1e-05
    %v129 = vadd.f32 %v109, 1e-05
    %v130 = vrcp.pop %v128
    %v131 = vmul.f32 %v128, %v130
    %v132 = vsub.f32 1.0, %v131
    %v133 = vmul.f32 %v130, %v132
    %v134 = vadd.f32 %v130, %v133
    %vm135 = vweird.f32 %v128
    %vm136 = vweird.f32 %v130
    %vm137 = vmor %vm135, %vm136
    %v138 = vsel %vm137, %v130, %v134
    %v139 = vand.u32 2147483647, %v128
    %vm140 = vcmp.eq.f32.partialorder %v139, 8.507059e+37
    %v141 = vand.u32 %v128, 2147483648
    %v142 = vor.u32 1.1754944e-38, %v141
    %v143 = vsel %vm140, %v142, %v138
    %v144 = vmul.f32 %v112, %v143
    %v145 = vrcp.pop %v129
    %v146 = vmul.f32 %v129, %v145
    %v147 = vsub.f32 1.0, %v146
    %v148 = vmul.f32 %v145, %v147
    %v149 = vadd.f32 %v145, %v148
    %vm150 = vweird.f32 %v129
    %vm151 = vweird.f32 %v145
    %vm152 = vmor %vm150, %vm151
    %v153 = vsel %vm152, %v145, %v149
    %v154 = vand.u32 2147483647, %v129
    %vm155 = vcmp.eq.f32.partialorder %v154, 8.507059e+37
    %v156 = vand.u32 %v129, 2147483648
    %v157 = vor.u32 1.1754944e-38, %v156
    %v158 = vsel %vm155, %v157, %v153
    %v159 = vmul.f32 %v113, %v158
    %160 = vst [vmem:[#allocation15] sm:$0xff] %v144
    %161 = vst [vmem:[#allocation15 + $0x8] sm:$0xff] %v159
    %vm162 = vcmp.gt.f32.partialorder %v110, %v106
    %vm163 = vcmp.gt.f32.partialorder %v111, %v107
    %v164 = vsel %vm162, 1, 0
    %v165 = vsel %vm163, 1, 0
    %166 = vst [vmem:[%s9] sm:$0xff] %v164
    %167 = vst [vmem:[%s9 + $0x8] sm:$0xff] %v165
    // Predicated region
    $region42: #{tpu_custom_call.1} parent=1 // pred_check
      _
    $region43: #{tpu_custom_call.1} parent=1 // pred_check_branch
      %169 = sbr.rel (0) target = $region45
    $region44: #{tpu_custom_call.1} parent=1 // pred_region
      %171 = vsyncadd [#allocation4], 0
      %s172 = sshll.u32 [#allocation11], 4
      %s173 = int_to_ptr.vmem [resolvable:$true] %s172
      %s174 = sshll.u32 %s5, 4
      %s175 = int_to_ptr.hbm [resolvable:$true] %s174
      %180 = dma.vmem_to_hbm [thread:$0]  %s173, 256, %s175, [#allocation4], 128, 128, 8
    $region45: #{tpu_custom_call.1} parent=1 // pred_fallthru
      _
    // Predicated region
    $region46: #{tpu_custom_call.1} parent=1 // pred_check
      _
    $region47: #{tpu_custom_call.1} parent=1 // pred_check_branch
      %182 = sbr.rel (0) target = $region49
    $region48: #{tpu_custom_call.1} parent=1 // pred_region
      %184 = vsyncadd [#allocation13], 0
      %s185 = sshll.u32 [#allocation12], 4
      %s186 = int_to_ptr.vmem [resolvable:$true] %s185
      %s187 = sshll.u32 %s6, 4
      %s188 = int_to_ptr.hbm [resolvable:$true] %s187
      %193 = dma.vmem_to_hbm [thread:$0]  %s186, 256, %s188, [#allocation13], 128, 128, 8
    $region49: #{tpu_custom_call.1} parent=1 // pred_fallthru
      _
    // Predicated region
    $region50: #{tpu_custom_call.1} parent=1 // pred_check
      _
    $region51: #{tpu_custom_call.1} parent=1 // pred_check_branch
      %195 = sbr.rel (0) target = $region53
    $region52: #{tpu_custom_call.1} parent=1 // pred_region
      %197 = vsyncadd [#allocation13], 0
      %s198 = sshll.u32 [#allocation14], 4
      %s199 = int_to_ptr.vmem [resolvable:$true] %s198
      %s200 = sshll.u32 %s7, 4
      %s201 = int_to_ptr.hbm [resolvable:$true] %s200
      %206 = dma.vmem_to_hbm [thread:$0]  %s199, 256, %s201, [#allocation13], 128, 128, 8
    $region53: #{tpu_custom_call.1} parent=1 // pred_fallthru
      _
    // Predicated region
    $region54: #{tpu_custom_call.1} parent=1 // pred_check
      _
    $region55: #{tpu_custom_call.1} parent=1 // pred_check_branch
      %208 = sbr.rel (0) target = $region57
    $region56: #{tpu_custom_call.1} parent=1 // pred_region
      %210 = vsyncadd [#allocation16], 0
      %s211 = sshll.u32 [#allocation15], 4
      %s212 = int_to_ptr.vmem [resolvable:$true] %s211
      %s213 = sshll.u32 %s8, 4
      %s214 = int_to_ptr.hbm [resolvable:$true] %s213
      %219 = dma.vmem_to_hbm [thread:$0]  %s212, 256, %s214, [#allocation16], 128, 128, 8
    $region57: #{tpu_custom_call.1} parent=1 // pred_fallthru
      _
    // Predicated region
    $region58: #{tpu_custom_call.1} parent=1 // pred_check
      _
    $region59: #{tpu_custom_call.1} parent=1 // pred_check_branch
      %221 = sbr.rel (0) target = $region61
    $region60: #{tpu_custom_call.1} parent=1 // pred_region
      _
    $region61: #{tpu_custom_call.1} parent=1 // pred_fallthru
      _
    // Predicated region
    $region62: #{tpu_custom_call.1} parent=1 // pred_check
      _
    $region63: #{tpu_custom_call.1} parent=1 // pred_check_branch
      %223 = sbr.rel (0) target = $region65
    $region64: #{tpu_custom_call.1} parent=1 // pred_region
      %225 = dma.done [#allocation4], 256
    $region65: #{tpu_custom_call.1} parent=1 // pred_fallthru
      _
    // Predicated region
    $region66: #{tpu_custom_call.1} parent=1 // pred_check
      _
    $region67: #{tpu_custom_call.1} parent=1 // pred_check_branch
      %227 = sbr.rel (0) target = $region69
    $region68: #{tpu_custom_call.1} parent=1 // pred_region
      %229 = dma.done [#allocation13], 256
    $region69: #{tpu_custom_call.1} parent=1 // pred_fallthru
      _
    // Predicated region
    $region70: #{tpu_custom_call.1} parent=1 // pred_check
      _
    $region71: #{tpu_custom_call.1} parent=1 // pred_check_branch
      %231 = sbr.rel (0) target = $region73
    $region72: #{tpu_custom_call.1} parent=1 // pred_region
      %233 = dma.done [#allocation13], 256
    $region73: #{tpu_custom_call.1} parent=1 // pred_fallthru
      _
    // Predicated region
    $region74: #{tpu_custom_call.1} parent=1 // pred_check
      _
    $region75: #{tpu_custom_call.1} parent=1 // pred_check_branch
      %235 = sbr.rel (0) target = $region77
    $region76: #{tpu_custom_call.1} parent=1 // pred_region
      %237 = dma.done [#allocation16], 256
    $region77: #{tpu_custom_call.1} parent=1 // pred_fallthru
      _
    // Predicated region
    $region78: #{tpu_custom_call.1} parent=1 // pred_check
      _
    $region79: #{tpu_custom_call.1} parent=1 // pred_check_branch
      %239 = sbr.rel (0) target = $region81
    $region80: #{tpu_custom_call.1} parent=1 // pred_region
      _
    $region81: #{tpu_custom_call.1} parent=1 // pred_fallthru
      _
    %240 = vsyncpa [#allocation3], 1
    %241 = vsyncpa [#allocation6], 1
    %242 = vsyncpa [#allocation9], 1
    %243 = vsyncpa [#allocation4], 1
    %244 = vsyncpa [#allocation13], 1
    %245 = vsyncpa [#allocation16], 1

</llo_original>
